<compile_context>
chip_gen: v5e
topology: v5e:2x2
jax: 0.10.0
libtpu: 0.0.40
codegen_flags: <defaults>
</compile_context>

<pallas_src>
import functools

import jax
import jax.numpy as jnp
from jax.experimental import pallas as pl
from jax.experimental.pallas import tpu as pltpu


def _scaled_relu_kernel(x_ref, o_ref, *, scale):
    x = x_ref[...]
    o_ref[...] = jnp.maximum(x, jnp.zeros_like(x)) * jnp.asarray(scale, x.dtype)


# itemsize (bytes) -> required sublane multiple for the second-to-last block dim
_SUBLANE_MULTIPLE = {4: 8, 2: 16, 1: 32}

# Candidate lane widths (largest first); all multiples of 128.
_LANE_WIDTHS = (1024, 512, 256, 128)

# ~8 MiB per block; in + out, double-buffered -> ~32 MiB VMEM footprint.
_TARGET_BLOCK_BYTES = 8 * 1024 * 1024
_VMEM_LIMIT_BYTES = 48 * 1024 * 1024


def _reference(x, scale):
    return jnp.maximum(x, 0) * scale


def scaled_relu(x, scale=1.0 / 16.0, *, min_pallas_elements=1 << 20):
    """Elementwise relu(x) * scale. Pallas path for large, lane-aligned float arrays."""
    orig_shape = x.shape
    dtype = x.dtype
    n = x.size

    # Tiny inputs or integer dtypes: let XLA handle/fuse it (also avoids the
    # scale->0 silent-zero hazard for ints).
    if n == 0 or n < min_pallas_elements or not jnp.issubdtype(dtype, jnp.floating):
        return _reference(x, scale)

    # Widest lane width that divides n: no padding, slicing, or tail concat.
    lane_width = next((lw for lw in _LANE_WIDTHS if n % lw == 0), None)
    if lane_width is None:
        # TODO(synk): ragged element count (<128 divisor). XLA fallback keeps
        # HBM traffic at the 2n minimum; a pad+slice wrapper would cost 2-3x.
        return _reference(x, scale)

    itemsize = jnp.dtype(dtype).itemsize
    sublane = _SUBLANE_MULTIPLE.get(itemsize, 8)

    rows = n // lane_width
    slab = x.reshape(rows, lane_width)

    # Keep the block ~8 MiB regardless of dtype itemsize.
    block_rows = max(
        sublane,
        (_TARGET_BLOCK_BYTES // (lane_width * itemsize)) // sublane * sublane,
    )

    if rows <= 2 * sublane:
        # Tiny slab: single full-extent block (always a legal block shape).
        br = rows
    else:
        # Guarantee >= 2 grid steps so the "parallel" axis can shard across the
        # two TensorCores on v7x; keep the block a sublane multiple. Ragged
        # final blocks are masked by Pallas (grid uses cdiv).
        half = (pl.cdiv(rows, 2) + sublane - 1) // sublane * sublane
        br = min(block_rows, half)

    grid = (pl.cdiv(rows, br),)

    kernel = functools.partial(_scaled_relu_kernel, scale=scale)

    out_slab = pl.pallas_call(
        kernel,
        out_shape=jax.ShapeDtypeStruct((rows, lane_width), dtype),
        grid_spec=pltpu.PrefetchScalarGridSpec(
            num_scalar_prefetch=0,
            grid=grid,
            in_specs=[pl.BlockSpec((br, lane_width), lambda i: (i, 0))],
            out_specs=pl.BlockSpec((br, lane_width), lambda i: (i, 0)),
        ),
        compiler_params=pltpu.CompilerParams(
            dimension_semantics=("parallel",),
            vmem_limit_bytes=_VMEM_LIMIT_BYTES,
        ),
        cost_estimate=pl.CostEstimate(
            flops=2 * n,
            transcendentals=0,
            bytes_accessed=2 * n * itemsize,
        ),
    )(slab)

    return out_slab.reshape(orig_shape)


if __name__ == "__main__":
    key = jax.random.PRNGKey(0)
    k1, k2 = jax.random.split(key)
    scale = 1.0 / 16.0

    # Small NCHW activation consistent with the module: (B=2, C=4, H=16, W=16).
    x = jax.random.normal(k1, (2, 4, 16, 16), dtype=jnp.float32)
    y = jax.block_until_ready(scaled_relu(x, scale, min_pallas_elements=0))
    assert y.shape == x.shape and y.dtype == x.dtype
    assert jnp.allclose(y, jnp.maximum(x, 0.0) * scale, atol=1e-6, rtol=1e-6)

    # Slightly larger case exercising a multi-step "parallel" grid (2 blocks).
    x2 = jax.random.normal(k2, (4, 8, 32, 32), dtype=jnp.float32)
    y2 = jax.block_until_ready(scaled_relu(x2, scale, min_pallas_elements=0))
    assert jnp.allclose(y2, jnp.maximum(x2, 0.0) * scale, atol=1e-6, rtol=1e-6)

    # Ragged element count -> clean XLA fallback (no pad/slice copies).
    x3 = jax.random.normal(key, (3, 5, 7), dtype=jnp.float32)
    y3 = jax.block_until_ready(scaled_relu(x3, scale))
    assert jnp.allclose(y3, jnp.maximum(x3, 0.0) * scale, atol=1e-6, rtol=1e-6)

    print("KERNEL_OK")
</pallas_src>

<mosaic_0001>
module attributes {stable_mosaic.version = 11 : i64} {
  func.func @_scaled_relu_kernel(%arg0: i32, %arg1: memref<2x1024xf32, #tpu.memory_space<vmem>>, %arg2: memref<2x1024xf32, #tpu.memory_space<vmem>>) attributes {dimension_semantics = [#tpu.dimension_semantics<parallel>], iteration_bounds = array<i64: 1>, scalar_prefetch = 0 : i64, scratch_operands = 0 : i64, tpu.core_type = #tpu.core_type<tc>, window_params = [{transform_indices = @transform_0, window_bounds = array<i64: 2, 1024>}, {transform_indices = @transform_1, window_bounds = array<i64: 2, 1024>}]} {
    %c0 = arith.constant 0 : index
    %c0_0 = arith.constant 0 : index
    %0 = vector.load %arg1[%c0, %c0_0] : memref<2x1024xf32, #tpu.memory_space<vmem>>, vector<2x1024xf32>
    %cst = arith.constant 0.000000e+00 : f32
    %1 = vector.broadcast %cst : f32 to vector<2x1024xf32>
    %2 = arith.maximumf %0, %1 : vector<2x1024xf32>
    %cst_1 = arith.constant 6.250000e-02 : f32
    %3 = vector.broadcast %cst_1 : f32 to vector<2x1024xf32>
    %4 = arith.mulf %2, %3 : vector<2x1024xf32>
    %c0_2 = arith.constant 0 : index
    %c0_3 = arith.constant 0 : index
    %5 = vector.load %arg2[%c0_2, %c0_3] : memref<2x1024xf32, #tpu.memory_space<vmem>>, vector<2x1024xf32>
    tpu.vector_store %arg2[%c0_2, %c0_3], %4 {strides = array<i32>} : memref<2x1024xf32, #tpu.memory_space<vmem>>, vector<2x1024xf32>,
    return
  }
  func.func @transform_0(%arg0: i32) -> (i32, i32) {
    %c0_i32 = arith.constant 0 : i32
    %c0_i32_0 = arith.constant 0 : i32
    return %arg0, %c0_i32 : i32, i32
  }
  func.func @transform_1(%arg0: i32) -> (i32, i32) {
    %c0_i32 = arith.constant 0 : i32
    %c0_i32_0 = arith.constant 0 : i32
    return %arg0, %c0_i32 : i32, i32
  }
}

</mosaic_0001>

<llo_original>
// kernel: tpu_custom_call.1
$region0: #{tpu_custom_call.1}
  #allocation0 [shape = 'u32[]', space=smem, size = 0x4, offset = 0x4, fixed_abs, tag = 'smem constant byte address 0x4 - core index']
  #allocation1 [shape = 'u32[72,128]{1,0:T(1,128)}', space=vmem, size = 0x9000, scoped, tag = 'internal scratch']
  %s0 = inlined_call_operand.hbm [shape: f32[2,1024], index: 0, kind: input, shape index: {}]
  %s1 = inlined_call_operand.hbm [shape: f32[2,1024], index: 1, kind: output, shape index: {}]
  %s2 = sld [smem:[#allocation0]]
  $region18: #{tpu_custom_call.1} parent=0
    _
  %s4 = ssub.s32 1, %s2
  %s5 = scalar_select 0, %s4, %s2
  $region1: #{tpu_custom_call.1} parent=0
    #allocation2 [shape = 'u8[8192]{0}', space=vmem, size = 0x2000, scoped, tag = 'input window, operand 0, single buffered']
    #allocation3 [shape = 's32[1]{0}', space=sflag, size = 0x4, scoped, tag = 'scoped memory for tpu_custom_call.1']
    #allocation4 [shape = 's32[1]{0}', space=sflag, size = 0x4, scoped, tag = 'scoped memory for tpu_custom_call.1']
    #allocation5 [shape = 'u8[8192]{0}', space=vmem, size = 0x2000, scoped, tag = 'output window, operand 0, single buffered']
    %6 = vsyncpa [#allocation3], 0
    %7 = vsyncpa [#allocation4], 0
    // Predicated region
    $region2: #{tpu_custom_call.1} parent=1 // pred_check
      _
    $region3: #{tpu_custom_call.1} parent=1 // pred_check_branch
      %9 = sbr.rel (0) target = $region5
    $region4: #{tpu_custom_call.1} parent=1 // pred_region
      %11 = vsyncadd [#allocation3], 0
      %s13 = sshll.u32 %s0, 4
      %s14 = int_to_ptr.hbm [resolvable:$true] %s13
      %s15 = sshll.u32 [#allocation2], 4
      %s16 = int_to_ptr.vmem [resolvable:$true] %s15
      %18 = dma.hbm_to_vmem [thread:$0]  %s14, 256, %s16, [#allocation3]
    $region5: #{tpu_custom_call.1} parent=1 // pred_fallthru
      _
    // Predicated region
    $region6: #{tpu_custom_call.1} parent=1 // pred_check
      _
    $region7: #{tpu_custom_call.1} parent=1 // pred_check_branch
      %20 = sbr.rel (0) target = $region9
    $region8: #{tpu_custom_call.1} parent=1 // pred_region
      %22 = dma.done [#allocation3], 256
    $region9: #{tpu_custom_call.1} parent=1 // pred_fallthru
      _
    %v23 = vld [vmem:[#allocation2] sm:$0xff]
    %v24 = vld [vmem:[#allocation2 + $0x8] sm:$0xff]
    %v25 = vmax.f32 %v23, 0.0
    %v26 = vmax.f32 %v24, 0.0
    %v27 = vmul.f32 %v25, 0.0625
    %v28 = vmul.f32 %v26, 0.0625
    %29 = vst [vmem:[#allocation5] sm:$0xff] %v27
    %30 = vst [vmem:[#allocation5 + $0x8] sm:$0xff] %v28
    // Predicated region
    $region10: #{tpu_custom_call.1} parent=1 // pred_check
      _
    $region11: #{tpu_custom_call.1} parent=1 // pred_check_branch
      %32 = sbr.rel (0) target = $region13
    $region12: #{tpu_custom_call.1} parent=1 // pred_region
      %34 = vsyncadd [#allocation4], 0
      %s36 = sshll.u32 [#allocation5], 4
      %s37 = int_to_ptr.vmem [resolvable:$true] %s36
      %s38 = sshll.u32 %s1, 4
      %s39 = int_to_ptr.hbm [resolvable:$true] %s38
      %41 = dma.vmem_to_hbm [thread:$0]  %s37, 256, %s39, [#allocation4]
    $region13: #{tpu_custom_call.1} parent=1 // pred_fallthru
      _
    // Predicated region
    $region14: #{tpu_custom_call.1} parent=1 // pred_check
      _
    $region15: #{tpu_custom_call.1} parent=1 // pred_check_branch
      %43 = sbr.rel (0) target = $region17
    $region16: #{tpu_custom_call.1} parent=1 // pred_region
      %45 = dma.done [#allocation4], 256
    $region17: #{tpu_custom_call.1} parent=1 // pred_fallthru
      _
    %46 = vsyncpa [#allocation3], 1
    %47 = vsyncpa [#allocation4], 1

</llo_original>
